<compile_context>
chip_gen: v5e
topology: v5e:2x2
jax: 0.10.0
libtpu: 0.0.40
codegen_flags: <defaults>
</compile_context>

<pallas_src>
import functools

import jax
import jax.numpy as jnp
from jax import lax
from jax.experimental import pallas as pl
from jax.experimental.pallas import tpu as pltpu


def _round_up(x, m):
    return ((x + m - 1) // m) * m


# ---------------------------------------------------------------------------
# Kernel 1: IR scoring  (mean pooling of the pre-masked context stream + bilinear)
# ---------------------------------------------------------------------------
def _ir_score_kernel(qw_ref, c_ref, invlen_ref, out_ref):
    # qw_ref:     (B_pad, D)        bf16  -- resident (constant index_map), = pool(q) @ W
    # c_ref:      (Lc, TILE_NC, D)  bf16  -- streamed context tile, Lc-major, pre-masked
    # invlen_ref: (1, TILE_NC)      f32   -- lane-dense 1/clen
    # out_ref:    (B_pad, TILE_NC)  f32   -- lane-dense output tile
    c = c_ref[...].astype(jnp.float32)          # elementwise math in f32 (v5e-safe)
    # Pooling sum over the leading axis: pure vreg accumulation on the VALU
    # (no cross-sublane / XLU reduction). Out-of-length tokens were remapped to
    # a zero embedding row in the wrapper, so no mask multiply is needed here.
    c_sum = jnp.sum(c, axis=0)                  # (TILE_NC, D)

    # Transpose-free contraction over D (last dim of both operands): no XLU
    # transpose; bf16 operands keep the MXU at full rate, f32 accumulation.
    scores = lax.dot_general(
        qw_ref[...], c_sum.astype(jnp.bfloat16),
        dimension_numbers=(((1,), (1,)), ((), ())),
        preferred_element_type=jnp.float32)     # (B_pad, TILE_NC)

    # 1/len applied to the tiny output tile instead of the (TILE_NC, D) pool.
    out_ref[...] = scores * invlen_ref[...]


def _choose_tile_nc(requested, Nc, Lc, D):
    nc128 = _round_up(max(Nc, 1), 128)
    tile = min(_round_up(requested, 128), nc128)
    # keep >=2 grid tiles when Nc is large enough so both v7x TCs get work
    if nc128 >= 256:
        tile = min(tile, _round_up(nc128 // 2, 128))
    # keep the double-buffered bf16 context stream inside a v7x-safe budget
    budget = 40 * 1024 * 1024
    while tile > 128 and 2 * Lc * tile * D * 2 > budget:
        tile -= 128
    return max(tile, 128)


def ir_score_from_tokens(emb, w_bilinear, q_tok, qlen, c_tok, clen, *,
                         tile_nc=512):
    """Masked-mean pooled bilinear IR scoring.

    Returns padded (B_pad, Nc_pad) f32 scores; real scores live in [:B, :Nc].
    """
    B, Lq = q_tok.shape
    Nc, Lc = c_tok.shape
    V, D = emb.shape
    B_pad = _round_up(B, 8)                      # sublane-aligned MXU M dim
    tile_nc = _choose_tile_nc(tile_nc, Nc, Lc, D)
    Nc_pad = _round_up(Nc, tile_nc)              # lane-dense output tiles

    # Embedding table with an extra all-zero row used as the padding /
    # out-of-length token id: masking happens on the tiny int32 ids *before*
    # the gather, so there is no big pad copy and no in-kernel mask multiply.
    pad_id = V
    emb_ext = jnp.concatenate(
        [emb.astype(jnp.bfloat16), jnp.zeros((1, D), jnp.bfloat16)], axis=0)

    clen = clen.astype(jnp.int32)
    c_tok_pad = jnp.full((Nc_pad, Lc), pad_id, jnp.int32).at[:Nc].set(
        c_tok.astype(jnp.int32))
    clen_pad = jnp.zeros((Nc_pad,), jnp.int32).at[:Nc].set(clen)
    c_tok_pad = jnp.where(jnp.arange(Lc)[None, :] < clen_pad[:, None],
                          c_tok_pad, pad_id)

    # Gather straight into the Lc-major streaming layout (Lc, Nc_pad, D).
    # TODO(synk): fuse this gather into the scoring kernel (scalar-prefetched
    # ids + in-kernel DMA gather from the HBM embedding table).
    c_emb_t = emb_ext[c_tok_pad.T]               # (Lc, Nc_pad, D) bf16

    inv_clen = jnp.zeros((1, Nc_pad), jnp.float32).at[0, :Nc].set(
        1.0 / jnp.maximum(clen, 1).astype(jnp.float32))   # clamp: no div-by-0

    # Hoisted q side (tiny, computed once, NOT per context tile): masked mean
    # pooling + q_pool @ W in f32, then cast to bf16 for the MXU.
    qlen = qlen.astype(jnp.int32)
    q_mask = (jnp.arange(Lq)[None, :] < qlen[:, None]).astype(jnp.float32)
    q_emb = emb_ext[q_tok].astype(jnp.float32)
    q_pool = (jnp.sum(q_emb * q_mask[:, :, None], axis=1)
              / jnp.maximum(qlen, 1)[:, None].astype(jnp.float32))
    qw = jnp.dot(q_pool, w_bilinear.astype(jnp.float32)).astype(jnp.bfloat16)
    qw_pad = jnp.zeros((B_pad, D), jnp.bfloat16).at[:B].set(qw)

    # VMEM limit derived from the actual tile footprint (double-buffered bf16
    # c stream, in-kernel f32 copy, out + invlen double buffers, resident qw),
    # clamped to stay inside v7x's 64 MiB per-TC VMEM.
    c_blk = Lc * tile_nc * D * 2
    footprint = (2 * c_blk                       # bf16 c double buffer
                 + 2 * c_blk * 2                 # in-kernel f32 tile copy
                 + 2 * B_pad * tile_nc * 4       # out double buffer
                 + 2 * tile_nc * 4               # invlen double buffer
                 + B_pad * D * 2)                # resident qw
    vmem_limit = int(min(max(footprint + (4 << 20), 16 << 20), 56 << 20))

    grid = (Nc_pad // tile_nc,)
    return pl.pallas_call(
        _ir_score_kernel,
        out_shape=jax.ShapeDtypeStruct((B_pad, Nc_pad), jnp.float32),
        grid_spec=pltpu.PrefetchScalarGridSpec(
            num_scalar_prefetch=0,
            grid=grid,
            in_specs=[
                pl.BlockSpec((B_pad, D), lambda i: (0, 0)),            # resident qw
                pl.BlockSpec((Lc, tile_nc, D), lambda i: (0, i, 0)),   # streamed c
                pl.BlockSpec((1, tile_nc), lambda i: (0, i)),          # lane-dense 1/len
            ],
            out_specs=pl.BlockSpec((B_pad, tile_nc), lambda i: (0, i)),
        ),
        compiler_params=pltpu.CompilerParams(
            dimension_semantics=("parallel",),   # megacore-split over Nc tiles
            vmem_limit_bytes=vmem_limit),
    )(qw_pad, c_emb_t, inv_clen)


# ---------------------------------------------------------------------------
# Kernel 2: IR loss  (BCE-with-logits + gumbel log-softmax + pairwise hinge)
# ---------------------------------------------------------------------------
def _ir_loss_kernel(scores_ref, gumbel_ref, idx_ref, out_ref, *,
                    n_rows, n_cols, k):
    s = scores_ref[...]                  # (B_pad, Nc_pad) f32 logits
    g = gumbel_ref[...]                  # (B_pad, Nc_pad) f32 gumbel noise
    idx = idx_ref[...]                   # (B_pad, K) int32 top-rouge columns
    b_pad, nc_pad = s.shape

    row_ok = lax.broadcasted_iota(jnp.int32, (b_pad, nc_pad), 0) < n_rows
    col_ok = lax.broadcasted_iota(jnp.int32, (b_pad, nc_pad), 1) < n_cols
    valid = jnp.logical_and(row_ok, col_ok)
    validf = valid.astype(jnp.float32)

    # One-hot of the K supervision columns built in-kernel from the tiny
    # (B_pad, K) index array (no (B_pad, K, Nc_pad) HBM stream).
    col3 = lax.broadcasted_iota(jnp.int32, (b_pad, k, nc_pad), 2)
    oh = (col3 == idx[:, :, None]).astype(jnp.float32)   # (B_pad, K, Nc_pad)
    t = jnp.sum(oh, axis=1)              # (B_pad, Nc_pad) target in {0,1}

    # BCEWithLogitsLoss (mean over the real B*Nc elements only)
    bce_elem = jnp.maximum(s, 0.0) - s * t + jnp.log1p(jnp.exp(-jnp.abs(s)))
    bce = jnp.sum(bce_elem * validf) / jnp.float32(n_rows * n_cols)

    # log(F.gumbel_softmax(s, tau=1)) == log_softmax(s + gumbel) over real cols
    # (log-space: no softmax-denominator reciprocal needed).
    z = jnp.where(valid, s + g, jnp.float32(-1e30))
    z = z - jnp.max(z, axis=-1, keepdims=True)
    ls = z - jnp.log(jnp.sum(jnp.exp(z), axis=-1, keepdims=True))

    # Pairwise hinge restricted to the K positive rows: O(B*K*Nc) work/VMEM
    # instead of the O(B*Nc^2) best-vs-rest tensor.
    best_ls = jnp.sum(oh * ls[:, None, :], axis=-1)              # (B_pad, K)
    rest_w = (1.0 - t) * validf                                  # (B_pad, Nc_pad)
    diff = jnp.maximum(1.0 - (best_ls[:, :, None] - ls[:, None, :]), 0.0)
    denom = jnp.float32(max(k * (n_cols - k) * n_rows, 1))       # guard Nc == k
    hinge = jnp.sum(diff * rest_w[:, None, :]) / denom

    out_ref[0] = hinge + bce


def ir_loss(scores_pad, gumbel_pad, rouge_idx_pad, *, n_rows, n_cols, k):
    out = pl.pallas_call(
        functools.partial(_ir_loss_kernel, n_rows=n_rows, n_cols=n_cols, k=k),
        out_shape=jax.ShapeDtypeStruct((1,), jnp.float32),
        in_specs=[pl.BlockSpec(memory_space=pltpu.MemorySpace.VMEM)] * 3,
        out_specs=pl.BlockSpec(memory_space=pltpu.MemorySpace.SMEM),
    )(scores_pad.astype(jnp.float32),
      gumbel_pad.astype(jnp.float32),
      rouge_idx_pad.astype(jnp.int32))
    return out[0]


# ---------------------------------------------------------------------------
# EndToEndModel.forward (ir_pretrain path) — JAX glue around the kernels
# ---------------------------------------------------------------------------
def end_to_end_forward(params, q_tok, qlen, c_tok, clen, c_rouge, gumbel_key,
                       n_ctx1_sents=3, tile_nc=512):
    B, _ = q_tok.shape
    Nc, _ = c_tok.shape

    # IR sub-model: pooled bilinear scoring kernel over the context stream.
    scores_pad = ir_score_from_tokens(params["emb"], params["w_bilinear"],
                                      q_tok, qlen, c_tok, clen,
                                      tile_nc=tile_nc)        # (B_pad, Nc_pad)
    B_pad, Nc_pad = scores_pad.shape
    c_scores = scores_pad[:B, :Nc]

    # top-k IR selection (torch.topk, sorted=False -> order irrelevant)
    _, topk_idx_ir1 = jax.lax.top_k(c_scores, n_ctx1_sents)   # (B, K)

    # supervision columns from c_rouge (passed to the loss kernel as indices)
    _, topk_rouge_idx = jax.lax.top_k(c_rouge, n_ctx1_sents)  # (B, K)
    rouge_idx_pad = jnp.zeros((B_pad, n_ctx1_sents), jnp.int32).at[:B].set(
        topk_rouge_idx.astype(jnp.int32))

    # deterministic gumbel noise (stands in for F.gumbel_softmax's sampling)
    u = jax.random.uniform(gumbel_key, (B, Nc), minval=1e-10, maxval=1.0)
    gumbel = -jnp.log(-jnp.log(u))
    gumbel_pad = jnp.zeros((B_pad, Nc_pad), jnp.float32).at[:B, :Nc].set(gumbel)

    ir1_loss = ir_loss(scores_pad, gumbel_pad, rouge_idx_pad,
                       n_rows=B, n_cols=Nc, k=n_ctx1_sents)

    # getSpans context gather; ragged torch.cat / pad_sequence of the selected
    # sentences is not emulated (unused by the ir_pretrain return path).
    # TODO(synk): rc_model / ag_model / RRRouge string scoring / use_ir2 stage
    # have no Pallas equivalent and are not required for ir_pretrain.
    ctx1 = c_tok[topk_idx_ir1]          # (B, K, Lc)
    ctx_len1 = clen[topk_idx_ir1]       # (B, K)
    del ctx1, ctx_len1

    ir2_loss = jnp.float32(0.0)         # use_ir2=False
    miss_rate = jnp.float32(0.0)        # bsi is None -> no misses
    return ir1_loss, ir1_loss, ir2_loss, miss_rate, None, None, None


# ---------------------------------------------------------------------------
# Pure-JAX reference (numerical sanity check of the kernels, same bf16 casts)
# ---------------------------------------------------------------------------
def _ref_scores_and_loss(params, q_tok, qlen, c_tok, clen, topk_rouge_idx,
                         gumbel, k):
    V, D = params["emb"].shape
    emb_ext = jnp.concatenate(
        [params["emb"].astype(jnp.bfloat16), jnp.zeros((1, D), jnp.bfloat16)],
        axis=0)
    B, Lq = q_tok.shape
    Nc, Lc = c_tok.shape
    c_tok_m = jnp.where(jnp.arange(Lc)[None, :] < clen[:, None], c_tok, V)
    c_sum = jnp.sum(emb_ext[c_tok_m].astype(jnp.float32), axis=1)   # (Nc, D)
    qm = (jnp.arange(Lq)[None, :] < qlen[:, None]).astype(jnp.float32)
    q_pool = (jnp.sum(emb_ext[q_tok].astype(jnp.float32) * qm[:, :, None],
                      axis=1)
              / jnp.maximum(qlen, 1)[:, None].astype(jnp.float32))
    qw = (q_pool @ params["w_bilinear"].astype(jnp.float32)).astype(jnp.bfloat16)
    scores = jax.lax.dot_general(
        qw, c_sum.astype(jnp.bfloat16),
        dimension_numbers=(((1,), (1,)), ((), ())),
        preferred_element_type=jnp.float32)
    scores = scores * (1.0 / jnp.maximum(clen, 1).astype(jnp.float32))[None, :]

    target = jnp.zeros((B, Nc), jnp.float32).at[
        jnp.arange(B)[:, None], topk_rouge_idx].set(1.0)
    bce = jnp.mean(jnp.maximum(scores, 0.0) - scores * target
                   + jnp.log1p(jnp.exp(-jnp.abs(scores))))
    ls = jax.nn.log_softmax(scores + gumbel, axis=-1)
    diff = jnp.maximum(1.0 - (ls[:, :, None] - ls[:, None, :]), 0.0)
    w = target[:, :, None] * (1.0 - target[:, None, :])
    hinge = jnp.mean(jnp.sum(diff * w, axis=(1, 2)) / (k * (Nc - k)))
    return scores, hinge + bce


if __name__ == "__main__":
    # small, deterministic problem sizes
    B, Nc = 2, 8            # question batch, number of candidate context sentences
    Lq, Lc = 8, 12          # question / context sentence lengths (padded)
    D, V = 32, 50           # hidden size, vocab size
    K = 3                   # n_ctx1_sents

    root = jax.random.PRNGKey(0)
    k_emb, k_w, k_q, k_c, k_ql, k_cl, k_rouge, k_gumbel = jax.random.split(root, 8)

    params = {
        "emb": jax.random.normal(k_emb, (V, D), jnp.float32) * 0.1,
        "w_bilinear": jax.random.normal(k_w, (D, D), jnp.float32) * (1.0 / jnp.sqrt(D)),
    }

    q_tok = jax.random.randint(k_q, (B, Lq), 0, V, jnp.int32)
    c_tok = jax.random.randint(k_c, (Nc, Lc), 0, V, jnp.int32)
    qlen = jax.random.randint(k_ql, (B,), 3, Lq + 1, jnp.int32)
    clen = jax.random.randint(k_cl, (Nc,), 4, Lc + 1, jnp.int32)
    c_rouge = jax.random.uniform(k_rouge, (B, Nc), jnp.float32)

    outs = end_to_end_forward(params, q_tok, qlen, c_tok, clen, c_rouge,
                              k_gumbel, n_ctx1_sents=K)
    ir1_loss = jax.block_until_ready(outs[0])

    # sanity check against a pure-JAX reference of the same math
    scores_pad = ir_score_from_tokens(params["emb"], params["w_bilinear"],
                                      q_tok, qlen, c_tok, clen)
    scores_k = jax.block_until_ready(scores_pad[:B, :Nc])

    _, topk_rouge_idx = jax.lax.top_k(c_rouge, K)
    u = jax.random.uniform(k_gumbel, (B, Nc), minval=1e-10, maxval=1.0)
    gumbel = -jnp.log(-jnp.log(u))
    scores_ref, loss_ref = _ref_scores_and_loss(
        params, q_tok, qlen, c_tok, clen, topk_rouge_idx, gumbel, K)

    assert bool(jnp.isfinite(ir1_loss)), "non-finite ir1_loss"
    assert jnp.allclose(scores_k, scores_ref, rtol=1e-3, atol=1e-3), "score mismatch"
    assert jnp.allclose(ir1_loss, loss_ref, rtol=1e-3, atol=1e-3), "loss mismatch"

    print("KERNEL_OK")
</pallas_src>

<mosaic_0001>
module attributes {stable_mosaic.version = 11 : i64} {
  func.func @_ir_score_kernel(%arg0: i32, %arg1: memref<8x32xbf16, #tpu.memory_space<vmem>>, %arg2: memref<12x128x32xbf16, #tpu.memory_space<vmem>>, %arg3: memref<1x128xf32, #tpu.memory_space<vmem>>, %arg4: memref<8x128xf32, #tpu.memory_space<vmem>>) attributes {dimension_semantics = [#tpu.dimension_semantics<parallel>], iteration_bounds = array<i64: 1>, scalar_prefetch = 0 : i64, scratch_operands = 0 : i64, tpu.core_type = #tpu.core_type<tc>, window_params = [{pipeline_mode = #tpu.pipeline_mode<synchronous>, transform_indices = @transform_0, window_bounds = array<i64: 8, 32>}, {transform_indices = @transform_1, window_bounds = array<i64: 12, 128, 32>}, {transform_indices = @transform_2, window_bounds = array<i64: 1, 128>}, {transform_indices = @transform_3, window_bounds = array<i64: 8, 128>}]} {
    %c0 = arith.constant 0 : index
    %c0_0 = arith.constant 0 : index
    %c0_1 = arith.constant 0 : index
    %0 = vector.load %arg2[%c0, %c0_0, %c0_1] : memref<12x128x32xbf16, #tpu.memory_space<vmem>>, vector<12x128x32xbf16>
    %1 = arith.extf %0 : vector<12x128x32xbf16> to vector<12x128x32xf32>
    %cst = arith.constant dense<0.000000e+00> : vector<128x32xf32>
    %2 = vector.multi_reduction <add>, %1, %cst [0] : vector<12x128x32xf32> to vector<128x32xf32>
    %c0_2 = arith.constant 0 : index
    %c0_3 = arith.constant 0 : index
    %3 = vector.load %arg1[%c0_2, %c0_3] : memref<8x32xbf16, #tpu.memory_space<vmem>>, vector<8x32xbf16>
    %4 = arith.truncf %2 : vector<128x32xf32> to vector<128x32xbf16>
    %cst_4 = arith.constant dense<0.000000e+00> : vector<8x128xf32>
    %5 = tpu.matmul %3, %4, %cst_4 {dimension_numbers = #tpu.dot_dimension_numbers<[1], [1], [0], [0], [0, 0, 1, 0], [], []>} : vector<8x32xbf16>, vector<128x32xbf16>, vector<8x128xf32> -> vector<8x128xf32>
    %c0_5 = arith.constant 0 : index
    %c0_6 = arith.constant 0 : index
    %6 = vector.load %arg3[%c0_5, %c0_6] : memref<1x128xf32, #tpu.memory_space<vmem>>, vector<1x128xf32>
    %7 = vector.broadcast %6 : vector<1x128xf32> to vector<8x128xf32>
    %8 = arith.mulf %5, %7 : vector<8x128xf32>
    %c0_7 = arith.constant 0 : index
    %c0_8 = arith.constant 0 : index
    %9 = vector.load %arg4[%c0_7, %c0_8] : memref<8x128xf32, #tpu.memory_space<vmem>>, vector<8x128xf32>
    tpu.vector_store %arg4[%c0_7, %c0_8], %8 {strides = array<i32>} : memref<8x128xf32, #tpu.memory_space<vmem>>, vector<8x128xf32>,
    return
  }
  func.func @transform_0(%arg0: i32) -> (i32, i32) {
    %c0_i32 = arith.constant 0 : i32
    %c0_i32_0 = arith.constant 0 : i32
    %c0_i32_1 = arith.constant 0 : i32
    return %c0_i32, %c0_i32_0 : i32, i32
  }
  func.func @transform_1(%arg0: i32) -> (i32, i32, i32) {
    %c0_i32 = arith.constant 0 : i32
    %c0_i32_0 = arith.constant 0 : i32
    %c0_i32_1 = arith.constant 0 : i32
    return %c0_i32, %arg0, %c0_i32_0 : i32, i32, i32
  }
  func.func @transform_2(%arg0: i32) -> (i32, i32) {
    %c0_i32 = arith.constant 0 : i32
    %c0_i32_0 = arith.constant 0 : i32
    return %c0_i32, %arg0 : i32, i32
  }
  func.func @transform_3(%arg0: i32) -> (i32, i32) {
    %c0_i32 = arith.constant 0 : i32
    %c0_i32_0 = arith.constant 0 : i32
    return %c0_i32, %arg0 : i32, i32
  }
}

</mosaic_0001>

<llo_original>
// kernel: tpu_custom_call.1
$region0: #{tpu_custom_call.1}
  #allocation0 [shape = 'u32[]', space=smem, size = 0x4, offset = 0x4, fixed_abs, tag = 'smem constant byte address 0x4 - core index']
  #allocation1 [shape = 'u32[72,128]{1,0:T(1,128)}', space=vmem, size = 0x9000, scoped, tag = 'internal scratch']
  %s0 = inlined_call_operand.vmem [shape: bf16[8,32], index: 0, kind: input, shape index: {}]
  %s1 = inlined_call_operand.vmem [shape: bf16[12,128,32], index: 1, kind: input, shape index: {}]
  %s2 = inlined_call_operand.vmem [shape: f32[1,128], index: 2, kind: input, shape index: {}]
  %s3 = inlined_call_operand.hbm [shape: f32[8,128], index: 3, kind: output, shape index: {}]
  %s4 = sld [smem:[#allocation0]]
  $region22: #{tpu_custom_call.1} parent=0
    _
  %s6 = ssub.s32 1, %s4
  %s7 = scalar_select 0, %s6, %s4
  $region1: #{tpu_custom_call.1} parent=0
    #allocation2 [shape = 'u8[4096]{0}', space=vmem, size = 0x1000, scoped, tag = 'output window, operand 0, single buffered']
    #allocation3 [shape = 's32[1]{0}', space=sflag, size = 0x4, scoped, tag = 'scoped memory for tpu_custom_call.1']
    %8 = vsyncpa [#allocation3], 0
    // Predicated region
    $region2: #{tpu_custom_call.1} parent=1 // pred_check
      _
    $region3: #{tpu_custom_call.1} parent=1 // pred_check_branch
      %10 = sbr.rel (0) target = $region5
    $region4: #{tpu_custom_call.1} parent=1 // pred_region
      _
    $region5: #{tpu_custom_call.1} parent=1 // pred_fallthru
      _
    // Predicated region
    $region6: #{tpu_custom_call.1} parent=1 // pred_check
      _
    $region7: #{tpu_custom_call.1} parent=1 // pred_check_branch
      %12 = sbr.rel (0) target = $region9
    $region8: #{tpu_custom_call.1} parent=1 // pred_region
      _
    $region9: #{tpu_custom_call.1} parent=1 // pred_fallthru
      _
    // Predicated region
    $region10: #{tpu_custom_call.1} parent=1 // pred_check
      _
    $region11: #{tpu_custom_call.1} parent=1 // pred_check_branch
      %14 = sbr.rel (0) target = $region13
    $region12: #{tpu_custom_call.1} parent=1 // pred_region
      _
    $region13: #{tpu_custom_call.1} parent=1 // pred_fallthru
      _
    %v15 = vld [vmem:[%s1] sm:$0xf]
    %v16 = vld [vmem:[%s1 + $0x4] sm:$0xf]
    %v17 = vld [vmem:[%s1 + $0x8] sm:$0xf]
    %v18 = vld [vmem:[%s1 + $0xc] sm:$0xf]
    %v19 = vld [vmem:[%s1 + $0x10] sm:$0xf]
    %v20 = vld [vmem:[%s1 + $0x14] sm:$0xf]
    %v21 = vld [vmem:[%s1 + $0x18] sm:$0xf]
    %v22 = vld [vmem:[%s1 + $0x1c] sm:$0xf]
    %v23 = vld [vmem:[%s1 + $0x20] sm:$0xf]
    %v24 = vld [vmem:[%s1 + $0x24] sm:$0xf]
    %v25 = vld [vmem:[%s1 + $0x28] sm:$0xf]
    %v26 = vld [vmem:[%s1 + $0x2c] sm:$0xf]
    %v27 = vld [vmem:[%s1 + $0x30] sm:$0xf]
    %v28 = vld [vmem:[%s1 + $0x34] sm:$0xf]
    %v29 = vld [vmem:[%s1 + $0x38] sm:$0xf]
    %v30 = vld [vmem:[%s1 + $0x3c] sm:$0xf]
    %v31 = vld [vmem:[%s1 + $0x40] sm:$0xf]
    %v32 = vld [vmem:[%s1 + $0x44] sm:$0xf]
    %v33 = vld [vmem:[%s1 + $0x48] sm:$0xf]
    %v34 = vld [vmem:[%s1 + $0x4c] sm:$0xf]
    %v35 = vld [vmem:[%s1 + $0x50] sm:$0xf]
    %v36 = vld [vmem:[%s1 + $0x54] sm:$0xf]
    %v37 = vld [vmem:[%s1 + $0x58] sm:$0xf]
    %v38 = vld [vmem:[%s1 + $0x5c] sm:$0xf]
    %v39 = vld [vmem:[%s1 + $0x60] sm:$0xf]
    %v40 = vld [vmem:[%s1 + $0x64] sm:$0xf]
    %v41 = vld [vmem:[%s1 + $0x68] sm:$0xf]
    %v42 = vld [vmem:[%s1 + $0x6c] sm:$0xf]
    %v43 = vld [vmem:[%s1 + $0x70] sm:$0xf]
    %v44 = vld [vmem:[%s1 + $0x74] sm:$0xf]
    %v45 = vld [vmem:[%s1 + $0x78] sm:$0xf]
    %v46 = vld [vmem:[%s1 + $0x7c] sm:$0xf]
    %v47 = vld [vmem:[%s1 + $0x80] sm:$0xf]
    %v48 = vld [vmem:[%s1 + $0x84] sm:$0xf]
    %v49 = vld [vmem:[%s1 + $0x88] sm:$0xf]
    %v50 = vld [vmem:[%s1 + $0x8c] sm:$0xf]
    %v51 = vld [vmem:[%s1 + $0x90] sm:$0xf]
    %v52 = vld [vmem:[%s1 + $0x94] sm:$0xf]
    %v53 = vld [vmem:[%s1 + $0x98] sm:$0xf]
    %v54 = vld [vmem:[%s1 + $0x9c] sm:$0xf]
    %v55 = vld [vmem:[%s1 + $0xa0] sm:$0xf]
    %v56 = vld [vmem:[%s1 + $0xa4] sm:$0xf]
    %v57 = vld [vmem:[%s1 + $0xa8] sm:$0xf]
    %v58 = vld [vmem:[%s1 + $0xac] sm:$0xf]
    %v59 = vld [vmem:[%s1 + $0xb0] sm:$0xf]
    %v60 = vld [vmem:[%s1 + $0xb4] sm:$0xf]
    %v61 = vld [vmem:[%s1 + $0xb8] sm:$0xf]
    %v62 = vld [vmem:[%s1 + $0xbc] sm:$0xf]
    %v63 = vld [vmem:[%s1 + $0xc0] sm:$0xf]
    %v64 = vld [vmem:[%s1 + $0xc4] sm:$0xf]
    %v65 = vld [vmem:[%s1 + $0xc8] sm:$0xf]
    %v66 = vld [vmem:[%s1 + $0xcc] sm:$0xf]
    %v67 = vld [vmem:[%s1 + $0xd0] sm:$0xf]
    %v68 = vld [vmem:[%s1 + $0xd4] sm:$0xf]
    %v69 = vld [vmem:[%s1 + $0xd8] sm:$0xf]
    %v70 = vld [vmem:[%s1 + $0xdc] sm:$0xf]
    %v71 = vld [vmem:[%s1 + $0xe0] sm:$0xf]
    %v72 = vld [vmem:[%s1 + $0xe4] sm:$0xf]
    %v73 = vld [vmem:[%s1 + $0xe8] sm:$0xf]
    %v74 = vld [vmem:[%s1 + $0xec] sm:$0xf]
    %v75 = vld [vmem:[%s1 + $0xf0] sm:$0xf]
    %v76 = vld [vmem:[%s1 + $0xf4] sm:$0xf]
    %v77 = vld [vmem:[%s1 + $0xf8] sm:$0xf]
    %v78 = vld [vmem:[%s1 + $0xfc] sm:$0xf]
    %v79 = vld [vmem:[%s1 + $0x100] sm:$0xf]
    %v80 = vld [vmem:[%s1 + $0x104] sm:$0xf]
    %v81 = vld [vmem:[%s1 + $0x108] sm:$0xf]
    %v82 = vld [vmem:[%s1 + $0x10c] sm:$0xf]
    %v83 = vld [vmem:[%s1 + $0x110] sm:$0xf]
    %v84 = vld [vmem:[%s1 + $0x114] sm:$0xf]
    %v85 = vld [vmem:[%s1 + $0x118] sm:$0xf]
    %v86 = vld [vmem:[%s1 + $0x11c] sm:$0xf]
    %v87 = vld [vmem:[%s1 + $0x120] sm:$0xf]
    %v88 = vld [vmem:[%s1 + $0x124] sm:$0xf]
    %v89 = vld [vmem:[%s1 + $0x128] sm:$0xf]
    %v90 = vld [vmem:[%s1 + $0x12c] sm:$0xf]
    %v91 = vld [vmem:[%s1 + $0x130] sm:$0xf]
    %v92 = vld [vmem:[%s1 + $0x134] sm:$0xf]
    %v93 = vld [vmem:[%s1 + $0x138] sm:$0xf]
    %v94 = vld [vmem:[%s1 + $0x13c] sm:$0xf]
    %v95 = vld [vmem:[%s1 + $0x140] sm:$0xf]
    %v96 = vld [vmem:[%s1 + $0x144] sm:$0xf]
    %v97 = vld [vmem:[%s1 + $0x148] sm:$0xf]
    %v98 = vld [vmem:[%s1 + $0x14c] sm:$0xf]
    %v99 = vld [vmem:[%s1 + $0x150] sm:$0xf]
    %v100 = vld [vmem:[%s1 + $0x154] sm:$0xf]
    %v101 = vld [vmem:[%s1 + $0x158] sm:$0xf]
    %v102 = vld [vmem:[%s1 + $0x15c] sm:$0xf]
    %v103 = vld [vmem:[%s1 + $0x160] sm:$0xf]
    %v104 = vld [vmem:[%s1 + $0x164] sm:$0xf]
    %v105 = vld [vmem:[%s1 + $0x168] sm:$0xf]
    %v106 = vld [vmem:[%s1 + $0x16c] sm:$0xf]
    %v107 = vld [vmem:[%s1 + $0x170] sm:$0xf]
    %v108 = vld [vmem:[%s1 + $0x174] sm:$0xf]
    %v109 = vld [vmem:[%s1 + $0x178] sm:$0xf]
    %v110 = vld [vmem:[%s1 + $0x17c] sm:$0xf]
    %v111 = vld [vmem:[%s1 + $0x180] sm:$0xf]
    %v112 = vld [vmem:[%s1 + $0x184] sm:$0xf]
    %v113 = vld [vmem:[%s1 + $0x188] sm:$0xf]
    %v114 = vld [vmem:[%s1 + $0x18c] sm:$0xf]
    %v115 = vld [vmem:[%s1 + $0x190] sm:$0xf]
    %v116 = vld [vmem:[%s1 + $0x194] sm:$0xf]
    %v117 = vld [vmem:[%s1 + $0x198] sm:$0xf]
    %v118 = vld [vmem:[%s1 + $0x19c] sm:$0xf]
    %v119 = vld [vmem:[%s1 + $0x1a0] sm:$0xf]
    %v120 = vld [vmem:[%s1 + $0x1a4] sm:$0xf]
    %v121 = vld [vmem:[%s1 + $0x1a8] sm:$0xf]
    %v122 = vld [vmem:[%s1 + $0x1ac] sm:$0xf]
    %v123 = vld [vmem:[%s1 + $0x1b0] sm:$0xf]
    %v124 = vld [vmem:[%s1 + $0x1b4] sm:$0xf]
    %v125 = vld [vmem:[%s1 + $0x1b8] sm:$0xf]
    %v126 = vld [vmem:[%s1 + $0x1bc] sm:$0xf]
    %v127 = vld [vmem:[%s1 + $0x1c0] sm:$0xf]
    %v128 = vld [vmem:[%s1 + $0x1c4] sm:$0xf]
    %v129 = vld [vmem:[%s1 + $0x1c8] sm:$0xf]
    %v130 = vld [vmem:[%s1 + $0x1cc] sm:$0xf]
    %v131 = vld [vmem:[%s1 + $0x1d0] sm:$0xf]
    %v132 = vld [vmem:[%s1 + $0x1d4] sm:$0xf]
    %v133 = vld [vmem:[%s1 + $0x1d8] sm:$0xf]
    %v134 = vld [vmem:[%s1 + $0x1dc] sm:$0xf]
    %v135 = vld [vmem:[%s1 + $0x1e0] sm:$0xf]
    %v136 = vld [vmem:[%s1 + $0x1e4] sm:$0xf]
    %v137 = vld [vmem:[%s1 + $0x1e8] sm:$0xf]
    %v138 = vld [vmem:[%s1 + $0x1ec] sm:$0xf]
    %v139 = vld [vmem:[%s1 + $0x1f0] sm:$0xf]
    %v140 = vld [vmem:[%s1 + $0x1f4] sm:$0xf]
    %v141 = vld [vmem:[%s1 + $0x1f8] sm:$0xf]
    %v142 = vld [vmem:[%s1 + $0x1fc] sm:$0xf]
    %v143 = vld [vmem:[%s1 + $0x200] sm:$0xf]
    %v144 = vld [vmem:[%s1 + $0x204] sm:$0xf]
    %v145 = vld [vmem:[%s1 + $0x208] sm:$0xf]
    %v146 = vld [vmem:[%s1 + $0x20c] sm:$0xf]
    %v147 = vld [vmem:[%s1 + $0x210] sm:$0xf]
    %v148 = vld [vmem:[%s1 + $0x214] sm:$0xf]
    %v149 = vld [vmem:[%s1 + $0x218] sm:$0xf]
    %v150 = vld [vmem:[%s1 + $0x21c] sm:$0xf]
    %v151 = vld [vmem:[%s1 + $0x220] sm:$0xf]
    %v152 = vld [vmem:[%s1 + $0x224] sm:$0xf]
    %v153 = vld [vmem:[%s1 + $0x228] sm:$0xf]
    %v154 = vld [vmem:[%s1 + $0x22c] sm:$0xf]
    %v155 = vld [vmem:[%s1 + $0x230] sm:$0xf]
    %v156 = vld [vmem:[%s1 + $0x234] sm:$0xf]
    %v157 = vld [vmem:[%s1 + $0x238] sm:$0xf]
    %v158 = vld [vmem:[%s1 + $0x23c] sm:$0xf]
    %v159 = vld [vmem:[%s1 + $0x240] sm:$0xf]
    %v160 = vld [vmem:[%s1 + $0x244] sm:$0xf]
    %v161 = vld [vmem:[%s1 + $0x248] sm:$0xf]
    %v162 = vld [vmem:[%s1 + $0x24c] sm:$0xf]
    %v163 = vld [vmem:[%s1 + $0x250] sm:$0xf]
    %v164 = vld [vmem:[%s1 + $0x254] sm:$0xf]
    %v165 = vld [vmem:[%s1 + $0x258] sm:$0xf]
    %v166 = vld [vmem:[%s1 + $0x25c] sm:$0xf]
    %v167 = vld [vmem:[%s1 + $0x260] sm:$0xf]
    %v168 = vld [vmem:[%s1 + $0x264] sm:$0xf]
    %v169 = vld [vmem:[%s1 + $0x268] sm:$0xf]
    %v170 = vld [vmem:[%s1 + $0x26c] sm:$0xf]
    %v171 = vld [vmem:[%s1 + $0x270] sm:$0xf]
    %v172 = vld [vmem:[%s1 + $0x274] sm:$0xf]
    %v173 = vld [vmem:[%s1 + $0x278] sm:$0xf]
    %v174 = vld [vmem:[%s1 + $0x27c] sm:$0xf]
    %v175 = vld [vmem:[%s1 + $0x280] sm:$0xf]
    %v176 = vld [vmem:[%s1 + $0x284] sm:$0xf]
    %v177 = vld [vmem:[%s1 + $0x288] sm:$0xf]
    %v178 = vld [vmem:[%s1 + $0x28c] sm:$0xf]
    %v179 = vld [vmem:[%s1 + $0x290] sm:$0xf]
    %v180 = vld [vmem:[%s1 + $0x294] sm:$0xf]
    %v181 = vld [vmem:[%s1 + $0x298] sm:$0xf]
    %v182 = vld [vmem:[%s1 + $0x29c] sm:$0xf]
    %v183 = vld [vmem:[%s1 + $0x2a0] sm:$0xf]
    %v184 = vld [vmem:[%s1 + $0x2a4] sm:$0xf]
    %v185 = vld [vmem:[%s1 + $0x2a8] sm:$0xf]
    %v186 = vld [vmem:[%s1 + $0x2ac] sm:$0xf]
    %v187 = vld [vmem:[%s1 + $0x2b0] sm:$0xf]
    %v188 = vld [vmem:[%s1 + $0x2b4] sm:$0xf]
    %v189 = vld [vmem:[%s1 + $0x2b8] sm:$0xf]
    %v190 = vld [vmem:[%s1 + $0x2bc] sm:$0xf]
    %v191 = vld [vmem:[%s1 + $0x2c0] sm:$0xf]
    %v192 = vld [vmem:[%s1 + $0x2c4] sm:$0xf]
    %v193 = vld [vmem:[%s1 + $0x2c8] sm:$0xf]
    %v194 = vld [vmem:[%s1 + $0x2cc] sm:$0xf]
    %v195 = vld [vmem:[%s1 + $0x2d0] sm:$0xf]
    %v196 = vld [vmem:[%s1 + $0x2d4] sm:$0xf]
    %v197 = vld [vmem:[%s1 + $0x2d8] sm:$0xf]
    %v198 = vld [vmem:[%s1 + $0x2dc] sm:$0xf]
    %v199 = vld [vmem:[%s1 + $0x2e0] sm:$0xf]
    %v200 = vld [vmem:[%s1 + $0x2e4] sm:$0xf]
    %v201 = vld [vmem:[%s1 + $0x2e8] sm:$0xf]
    %v202 = vld [vmem:[%s1 + $0x2ec] sm:$0xf]
    %v203 = vld [vmem:[%s1 + $0x2f0] sm:$0xf]
    %v204 = vld [vmem:[%s1 + $0x2f4] sm:$0xf]
    %v205 = vld [vmem:[%s1 + $0x2f8] sm:$0xf]
    %v206 = vld [vmem:[%s1 + $0x2fc] sm:$0xf]
    %v207 = vunpack.c.l.bf16 %v15
    %v208 = vunpack.c.l.bf16 %v16
    %v209 = vunpack.c.l.bf16 %v17
    %v210 = vunpack.c.l.bf16 %v18
    %v211 = vunpack.c.l.bf16 %v19
    %v212 = vunpack.c.l.bf16 %v20
    %v213 = vunpack.c.l.bf16 %v21
    %v214 = vunpack.c.l.bf16 %v22
    %v215 = vunpack.c.l.bf16 %v23
    %v216 = vunpack.c.l.bf16 %v24
    %v217 = vunpack.c.l.bf16 %v25
    %v218 = vunpack.c.l.bf16 %v26
    %v219 = vunpack.c.l.bf16 %v27
    %v220 = vunpack.c.l.bf16 %v28
    %v221 = vunpack.c.l.bf16 %v29
    %v222 = vunpack.c.l.bf16 %v30
    %v223 = vunpack.c.l.bf16 %v31
    %v224 = vunpack.c.l.bf16 %v32
    %v225 = vunpack.c.l.bf16 %v33
    %v226 = vunpack.c.l.bf16 %v34
    %v227 = vunpack.c.l.bf16 %v35
    %v228 = vunpack.c.l.bf16 %v36
    %v229 = vunpack.c.l.bf16 %v37
    %v230 = vunpack.c.l.bf16 %v38
    %v231 = vunpack.c.l.bf16 %v39
    %v232 = vunpack.c.l.bf16 %v40
    %v233 = vunpack.c.l.bf16 %v41
    %v234 = vunpack.c.l.bf16 %v42
    %v235 = vunpack.c.l.bf16 %v43
    %v236 = vunpack.c.l.bf16 %v44
    %v237 = vunpack.c.l.bf16 %v45
    %v238 = vunpack.c.l.bf16 %v46
    %v239 = vunpack.c.l.bf16 %v47
    %v240 = vunpack.c.l.bf16 %v48
    %v241 = vunpack.c.l.bf16 %v49
    %v242 = vunpack.c.l.bf16 %v50
    %v243 = vunpack.c.l.bf16 %v51
    %v244 = vunpack.c.l.bf16 %v52
    %v245 = vunpack.c.l.bf16 %v53
    %v246 = vunpack.c.l.bf16 %v54
    %v247 = vunpack.c.l.bf16 %v55
    %v248 = vunpack.c.l.bf16 %v56
    %v249 = vunpack.c.l.bf16 %v57
    %v250 = vunpack.c.l.bf16 %v58
    %v251 = vunpack.c.l.bf16 %v59
    %v252 = vunpack.c.l.bf16 %v60
    %v253 = vunpack.c.l.bf16 %v61
    %v254 = vunpack.c.l.bf16 %v62
    %v255 = vunpack.c.l.bf16 %v63
    %v256 = vunpack.c.l.bf16 %v64
    %v257 = vunpack.c.l.bf16 %v65
    %v258 = vunpack.c.l.bf16 %v66
    %v259 = vunpack.c.l.bf16 %v67
    %v260 = vunpack.c.l.bf16 %v68
    %v261 = vunpack.c.l.bf16 %v69
    %v262 = vunpack.c.l.bf16 %v70
    %v263 = vunpack.c.l.bf16 %v71
    %v264 = vunpack.c.l.bf16 %v72
    %v265 = vunpack.c.l.bf16 %v73
    %v266 = vunpack.c.l.bf16 %v74
    %v267 = vunpack.c.l.bf16 %v75
    %v268 = vunpack.c.l.bf16 %v76
    %v269 = vunpack.c.l.bf16 %v77
    %v270 = vunpack.c.l.bf16 %v78
    %v271 = vunpack.c.l.bf16 %v79
    %v272 = vunpack.c.l.bf16 %v80
    %v273 = vunpack.c.l.bf16 %v81
    %v274 = vunpack.c.l.bf16 %v82
    %v275 = vunpack.c.l.bf16 %v83
    %v276 = vunpack.c.l.bf16 %v84
    %v277 = vunpack.c.l.bf16 %v85
    %v278 = vunpack.c.l.bf16 %v86
    %v279 = vunpack.c.l.bf16 %v87
    %v280 = vunpack.c.l.bf16 %v88
    %v281 = vunpack.c.l.bf16 %v89
    %v282 = vunpack.c.l.bf16 %v90
    %v283 = vunpack.c.l.bf16 %v91
    %v284 = vunpack.c.l.bf16 %v92
    %v285 = vunpack.c.l.bf16 %v93
    %v286 = vunpack.c.l.bf16 %v94
    %v287 = vunpack.c.l.bf16 %v95
    %v288 = vunpack.c.l.bf16 %v96
    %v289 = vunpack.c.l.bf16 %v97
    %v290 = vunpack.c.l.bf16 %v98
    %v291 = vunpack.c.l.bf16 %v99
    %v292 = vunpack.c.l.bf16 %v100
    %v293 = vunpack.c.l.bf16 %v101
    %v294 = vunpack.c.l.bf16 %v102
    %v295 = vunpack.c.l.bf16 %v103
    %v296 = vunpack.c.l.bf16 %v104
    %v297 = vunpack.c.l.bf16 %v105
    %v298 = vunpack.c.l.bf16 %v106
    %v299 = vunpack.c.l.bf16 %v107
    %v300 = vunpack.c.l.bf16 %v108
    %v301 = vunpack.c.l.bf16 %v109
    %v302 = vunpack.c.l.bf16 %v110
    %v303 = vunpack.c.l.bf16 %v111
    %v304 = vunpack.c.l.bf16 %v112
    %v305 = vunpack.c.l.bf16 %v113
    %v306 = vunpack.c.l.bf16 %v114
    %v307 = vunpack.c.l.bf16 %v115
    %v308 = vunpack.c.l.bf16 %v116
    %v309 = vunpack.c.l.bf16 %v117
    %v310 = vunpack.c.l.bf16 %v118
    %v311 = vunpack.c.l.bf16 %v119
    %v312 = vunpack.c.l.bf16 %v120
    %v313 = vunpack.c.l.bf16 %v121
    %v314 = vunpack.c.l.bf16 %v122
    %v315 = vunpack.c.l.bf16 %v123
    %v316 = vunpack.c.l.bf16 %v124
    %v317 = vunpack.c.l.bf16 %v125
    %v318 = vunpack.c.l.bf16 %v126
    %v319 = vunpack.c.l.bf16 %v127
    %v320 = vunpack.c.l.bf16 %v128
    %v321 = vunpack.c.l.bf16 %v129
    %v322 = vunpack.c.l.bf16 %v130
    %v323 = vunpack.c.l.bf16 %v131
    %v324 = vunpack.c.l.bf16 %v132
    %v325 = vunpack.c.l.bf16 %v133
    %v326 = vunpack.c.l.bf16 %v134
    %v327 = vunpack.c.l.bf16 %v135
    %v328 = vunpack.c.l.bf16 %v136
    %v329 = vunpack.c.l.bf16 %v137
    %v330 = vunpack.c.l.bf16 %v138
    %v331 = vunpack.c.l.bf16 %v139
    %v332 = vunpack.c.l.bf16 %v140
    %v333 = vunpack.c.l.bf16 %v141
    %v334 = vunpack.c.l.bf16 %v142
    %v335 = vunpack.c.l.bf16 %v143
    %v336 = vunpack.c.l.bf16 %v144
    %v337 = vunpack.c.l.bf16 %v145
    %v338 = vunpack.c.l.bf16 %v146
    %v339 = vunpack.c.l.bf16 %v147
    %v340 = vunpack.c.l.bf16 %v148
    %v341 = vunpack.c.l.bf16 %v149
    %v342 = vunpack.c.l.bf16 %v150
    %v343 = vunpack.c.l.bf16 %v151
    %v344 = vunpack.c.l.bf16 %v152
    %v345 = vunpack.c.l.bf16 %v153
    %v346 = vunpack.c.l.bf16 %v154
    %v347 = vunpack.c.l.bf16 %v155
    %v348 = vunpack.c.l.bf16 %v156
    %v349 = vunpack.c.l.bf16 %v157
    %v350 = vunpack.c.l.bf16 %v158
    %v351 = vunpack.c.l.bf16 %v159
    %v352 = vunpack.c.l.bf16 %v160
    %v353 = vunpack.c.l.bf16 %v161
    %v354 = vunpack.c.l.bf16 %v162
    %v355 = vunpack.c.l.bf16 %v163
    %v356 = vunpack.c.l.bf16 %v164
    %v357 = vunpack.c.l.bf16 %v165
    %v358 = vunpack.c.l.bf16 %v166
    %v359 = vunpack.c.l.bf16 %v167
    %v360 = vunpack.c.l.bf16 %v168
    %v361 = vunpack.c.l.bf16 %v169
    %v362 = vunpack.c.l.bf16 %v170
    %v363 = vunpack.c.l.bf16 %v171
    %v364 = vunpack.c.l.bf16 %v172
    %v365 = vunpack.c.l.bf16 %v173
    %v366 = vunpack.c.l.bf16 %v174
    %v367 = vunpack.c.l.bf16 %v175
    %v368 = vunpack.c.l.bf16 %v176
    %v369 = vunpack.c.l.bf16 %v177
    %v370 = vunpack.c.l.bf16 %v178
    %v371 = vunpack.c.l.bf16 %v179
    %v372 = vunpack.c.l.bf16 %v180
    %v373 = vunpack.c.l.bf16 %v181
    %v374 = vunpack.c.l.bf16 %v182
    %v375 = vunpack.c.l.bf16 %v183
    %v376 = vunpack.c.l.bf16 %v184
    %v377 = vunpack.c.l.bf16 %v185
    %v378 = vunpack.c.l.bf16 %v186
    %v379 = vunpack.c.l.bf16 %v187
    %v380 = vunpack.c.l.bf16 %v188
    %v381 = vunpack.c.l.bf16 %v189
    %v382 = vunpack.c.l.bf16 %v190
    %v383 = vunpack.c.l.bf16 %v191
    %v384 = vunpack.c.l.bf16 %v192
    %v385 = vunpack.c.l.bf16 %v193
    %v386 = vunpack.c.l.bf16 %v194
    %v387 = vunpack.c.l.bf16 %v195
    %v388 = vunpack.c.l.bf16 %v196
    %v389 = vunpack.c.l.bf16 %v197
    %v390 = vunpack.c.l.bf16 %v198
    %v391 = vunpack.c.l.bf16 %v199
    %v392 = vunpack.c.l.bf16 %v200
    %v393 = vunpack.c.l.bf16 %v201
    %v394 = vunpack.c.l.bf16 %v202
    %v395 = vunpack.c.l.bf16 %v203
    %v396 = vunpack.c.l.bf16 %v204
    %v397 = vunpack.c.l.bf16 %v205
    %v398 = vunpack.c.l.bf16 %v206
    %vm399 = vcmask 261120
    %v400 = vsel %vm399, %v207, 0.0
    %v401 = vsel %vm399, %v223, 0.0
    %v402 = vadd.f32 %v400, %v401
    %v403 = vsel %vm399, %v239, 0.0
    %v404 = vadd.f32 %v402, %v403
    %v405 = vsel %vm399, %v255, 0.0
    %v406 = vadd.f32 %v404, %v405
    %v407 = vsel %vm399, %v271, 0.0
    %v408 = vadd.f32 %v406, %v407
    %v409 = vsel %vm399, %v287, 0.0
    %v410 = vadd.f32 %v408, %v409
    %v411 = vsel %vm399, %v303, 0.0
    %v412 = vadd.f32 %v410, %v411
    %v413 = vsel %vm399, %v319, 0.0
    %v414 = vadd.f32 %v412, %v413
    %v415 = vsel %vm399, %v335, 0.0
    %v416 = vadd.f32 %v414, %v415
    %v417 = vsel %vm399, %v351, 0.0
    %v418 = vadd.f32 %v416, %v417
    %v419 = vsel %vm399, %v367, 0.0
    %v420 = vadd.f32 %v418, %v419
    %v421 = vsel %vm399, %v383, 0.0
    %v422 = vadd.f32 %v420, %v421
    %v423 = vsel %vm399, %v208, 0.0
    %v424 = vsel %vm399, %v224, 0.0
    %v425 = vadd.f32 %v423, %v424
    %v426 = vsel %vm399, %v240, 0.0
    %v427 = vadd.f32 %v425, %v426
    %v428 = vsel %vm399, %v256, 0.0
    %v429 = vadd.f32 %v427, %v428
    %v430 = vsel %vm399, %v272, 0.0
    %v431 = vadd.f32 %v429, %v430
    %v432 = vsel %vm399, %v288, 0.0
    %v433 = vadd.f32 %v431, %v432
    %v434 = vsel %vm399, %v304, 0.0
    %v435 = vadd.f32 %v433, %v434
    %v436 = vsel %vm399, %v320, 0.0
    %v437 = vadd.f32 %v435, %v436
    %v438 = vsel %vm399, %v336, 0.0
    %v439 = vadd.f32 %v437, %v438
    %v440 = vsel %vm399, %v352, 0.0
    %v441 = vadd.f32 %v439, %v440
    %v442 = vsel %vm399, %v368, 0.0
    %v443 = vadd.f32 %v441, %v442
    %v444 = vsel %vm399, %v384, 0.0
    %v445 = vadd.f32 %v443, %v444
    %v446 = vsel %vm399, %v209, 0.0
    %v447 = vsel %vm399, %v225, 0.0
    %v448 = vadd.f32 %v446, %v447
    %v449 = vsel %vm399, %v241, 0.0
    %v450 = vadd.f32 %v448, %v449
    %v451 = vsel %vm399, %v257, 0.0
    %v452 = vadd.f32 %v450, %v451
    %v453 = vsel %vm399, %v273, 0.0
    %v454 = vadd.f32 %v452, %v453
    %v455 = vsel %vm399, %v289, 0.0
    %v456 = vadd.f32 %v454, %v455
    %v457 = vsel %vm399, %v305, 0.0
    %v458 = vadd.f32 %v456, %v457
    %v459 = vsel %vm399, %v321, 0.0
    %v460 = vadd.f32 %v458, %v459
    %v461 = vsel %vm399, %v337, 0.0
    %v462 = vadd.f32 %v460, %v461
    %v463 = vsel %vm399, %v353, 0.0
    %v464 = vadd.f32 %v462, %v463
    %v465 = vsel %vm399, %v369, 0.0
    %v466 = vadd.f32 %v464, %v465
    %v467 = vsel %vm399, %v385, 0.0
    %v468 = vadd.f32 %v466, %v467
    %v469 = vsel %vm399, %v210, 0.0
    %v470 = vsel %vm399, %v226, 0.0
    %v471 = vadd.f32 %v469, %v470
    %v472 = vsel %vm399, %v242, 0.0
    %v473 = vadd.f32 %v471, %v472
    %v474 = vsel %vm399, %v258, 0.0
    %v475 = vadd.f32 %v473, %v474
    %v476 = vsel %vm399, %v274, 0.0
    %v477 = vadd.f32 %v475, %v476
    %v478 = vsel %vm399, %v290, 0.0
    %v479 = vadd.f32 %v477, %v478
    %v480 = vsel %vm399, %v306, 0.0
    %v481 = vadd.f32 %v479, %v480
    %v482 = vsel %vm399, %v322, 0.0
    %v483 = vadd.f32 %v481, %v482
    %v484 = vsel %vm399, %v338, 0.0
    %v485 = vadd.f32 %v483, %v484
    %v486 = vsel %vm399, %v354, 0.0
    %v487 = vadd.f32 %v485, %v486
    %v488 = vsel %vm399, %v370, 0.0
    %v489 = vadd.f32 %v487, %v488
    %v490 = vsel %vm399, %v386, 0.0
    %v491 = vadd.f32 %v489, %v490
    %v492 = vsel %vm399, %v211, 0.0
    %v493 = vsel %vm399, %v227, 0.0
    %v494 = vadd.f32 %v492, %v493
    %v495 = vsel %vm399, %v243, 0.0
    %v496 = vadd.f32 %v494, %v495
    %v497 = vsel %vm399, %v259, 0.0
    %v498 = vadd.f32 %v496, %v497
    %v499 = vsel %vm399, %v275, 0.0
    %v500 = vadd.f32 %v498, %v499
    %v501 = vsel %vm399, %v291, 0.0
    %v502 = vadd.f32 %v500, %v501
    %v503 = vsel %vm399, %v307, 0.0
    %v504 = vadd.f32 %v502, %v503
    %v505 = vsel %vm399, %v323, 0.0
    %v506 = vadd.f32 %v504, %v505
    %v507 = vsel %vm399, %v339, 0.0
    %v508 = vadd.f32 %v506, %v507
    %v509 = vsel %vm399, %v355, 0.0
    %v510 = vadd.f32 %v508, %v509
    %v511 = vsel %vm399, %v371, 0.0
    %v512 = vadd.f32 %v510, %v511
    %v513 = vsel %vm399, %v387, 0.0
    %v514 = vadd.f32 %v512, %v513
    %v515 = vsel %vm399, %v212, 0.0
    %v516 = vsel %vm399, %v228, 0.0
    %v517 = vadd.f32 %v515, %v516
    %v518 = vsel %vm399, %v244, 0.0
    %v519 = vadd.f32 %v517, %v518
    %v520 = vsel %vm399, %v260, 0.0
    %v521 = vadd.f32 %v519, %v520
    %v522 = vsel %vm399, %v276, 0.0
    %v523 = vadd.f32 %v521, %v522
    %v524 = vsel %vm399, %v292, 0.0
    %v525 = vadd.f32 %v523, %v524
    %v526 = vsel %vm399, %v308, 0.0
    %v527 = vadd.f32 %v525, %v526
    %v528 = vsel %vm399, %v324, 0.0
    %v529 = vadd.f32 %v527, %v528
    %v530 = vsel %vm399, %v340, 0.0
    %v531 = vadd.f32 %v529, %v530
    %v532 = vsel %vm399, %v356, 0.0
    %v533 = vadd.f32 %v531, %v532
    %v534 = vsel %vm399, %v372, 0.0
    %v535 = vadd.f32 %v533, %v534
    %v536 = vsel %vm399, %v388, 0.0
    %v537 = vadd.f32 %v535, %v536
    %v538 = vsel %vm399, %v213, 0.0
    %v539 = vsel %vm399, %v229, 0.0
    %v540 = vadd.f32 %v538, %v539
    %v541 = vsel %vm399, %v245, 0.0
    %v542 = vadd.f32 %v540, %v541
    %v543 = vsel %vm399, %v261, 0.0
    %v544 = vadd.f32 %v542, %v543
    %v545 = vsel %vm399, %v277, 0.0
    %v546 = vadd.f32 %v544, %v545
    %v547 = vsel %vm399, %v293, 0.0
    %v548 = vadd.f32 %v546, %v547
    %v549 = vsel %vm399, %v309, 0.0
    %v550 = vadd.f32 %v548, %v549
    %v551 = vsel %vm399, %v325, 0.0
    %v552 = vadd.f32 %v550, %v551
    %v553 = vsel %vm399, %v341, 0.0
    %v554 = vadd.f32 %v552, %v553
    %v555 = vsel %vm399, %v357, 0.0
    %v556 = vadd.f32 %v554, %v555
    %v557 = vsel %vm399, %v373, 0.0
    %v558 = vadd.f32 %v556, %v557
    %v559 = vsel %vm399, %v389, 0.0
    %v560 = vadd.f32 %v558, %v559
    %v561 = vsel %vm399, %v214, 0.0
    %v562 = vsel %vm399, %v230, 0.0
    %v563 = vadd.f32 %v561, %v562
    %v564 = vsel %vm399, %v246, 0.0
    %v565 = vadd.f32 %v563, %v564
    %v566 = vsel %vm399, %v262, 0.0
    %v567 = vadd.f32 %v565, %v566
    %v568 = vsel %vm399, %v278, 0.0
    %v569 = vadd.f32 %v567, %v568
    %v570 = vsel %vm399, %v294, 0.0
    %v571 = vadd.f32 %v569, %v570
    %v572 = vsel %vm399, %v310, 0.0
    %v573 = vadd.f32 %v571, %v572
    %v574 = vsel %vm399, %v326, 0.0
    %v575 = vadd.f32 %v573, %v574
    %v576 = vsel %vm399, %v342, 0.0
    %v577 = vadd.f32 %v575, %v576
    %v578 = vsel %vm399, %v358, 0.0
    %v579 = vadd.f32 %v577, %v578
    %v580 = vsel %vm399, %v374, 0.0
    %v581 = vadd.f32 %v579, %v580
    %v582 = vsel %vm399, %v390, 0.0
    %v583 = vadd.f32 %v581, %v582
    %v584 = vsel %vm399, %v215, 0.0
    %v585 = vsel %vm399, %v231, 0.0
    %v586 = vadd.f32 %v584, %v585
    %v587 = vsel %vm399, %v247, 0.0
    %v588 = vadd.f32 %v586, %v587
    %v589 = vsel %vm399, %v263, 0.0
    %v590 = vadd.f32 %v588, %v589
    %v591 = vsel %vm399, %v279, 0.0
    %v592 = vadd.f32 %v590, %v591
    %v593 = vsel %vm399, %v295, 0.0
    %v594 = vadd.f32 %v592, %v593
    %v595 = vsel %vm399, %v311, 0.0
    %v596 = vadd.f32 %v594, %v595
    %v597 = vsel %vm399, %v327, 0.0
    %v598 = vadd.f32 %v596, %v597
    %v599 = vsel %vm399, %v343, 0.0
    %v600 = vadd.f32 %v598, %v599
    %v601 = vsel %vm399, %v359, 0.0
    %v602 = vadd.f32 %v600, %v601
    %v603 = vsel %vm399, %v375, 0.0
    %v604 = vadd.f32 %v602, %v603
    %v605 = vsel %vm399, %v391, 0.0
    %v606 = vadd.f32 %v604, %v605
    %v607 = vsel %vm399, %v216, 0.0
    %v608 = vsel %vm399, %v232, 0.0
    %v609 = vadd.f32 %v607, %v608
    %v610 = vsel %vm399, %v248, 0.0
    %v611 = vadd.f32 %v609, %v610
    %v612 = vsel %vm399, %v264, 0.0
    %v613 = vadd.f32 %v611, %v612
    %v614 = vsel %vm399, %v280, 0.0
    %v615 = vadd.f32 %v613, %v614
    %v616 = vsel %vm399, %v296, 0.0
    %v617 = vadd.f32 %v615, %v616
    %v618 = vsel %vm399, %v312, 0.0
    %v619 = vadd.f32 %v617, %v618
    %v620 = vsel %vm399, %v328, 0.0
    %v621 = vadd.f32 %v619, %v620
    %v622 = vsel %vm399, %v344, 0.0
    %v623 = vadd.f32 %v621, %v622
    %v624 = vsel %vm399, %v360, 0.0
    %v625 = vadd.f32 %v623, %v624
    %v626 = vsel %vm399, %v376, 0.0
    %v627 = vadd.f32 %v625, %v626
    %v628 = vsel %vm399, %v392, 0.0
    %v629 = vadd.f32 %v627, %v628
    %v630 = vsel %vm399, %v217, 0.0
    %v631 = vsel %vm399, %v233, 0.0
    %v632 = vadd.f32 %v630, %v631
    %v633 = vsel %vm399, %v249, 0.0
    %v634 = vadd.f32 %v632, %v633
    %v635 = vsel %vm399, %v265, 0.0
    %v636 = vadd.f32 %v634, %v635
    %v637 = vsel %vm399, %v281, 0.0
    %v638 = vadd.f32 %v636, %v637
    %v639 = vsel %vm399, %v297, 0.0
    %v640 = vadd.f32 %v638, %v639
    %v641 = vsel %vm399, %v313, 0.0
    %v642 = vadd.f32 %v640, %v641
    %v643 = vsel %vm399, %v329, 0.0
    %v644 = vadd.f32 %v642, %v643
    %v645 = vsel %vm399, %v345, 0.0
    %v646 = vadd.f32 %v644, %v645
    %v647 = vsel %vm399, %v361, 0.0
    %v648 = vadd.f32 %v646, %v647
    %v649 = vsel %vm399, %v377, 0.0
    %v650 = vadd.f32 %v648, %v649
    %v651 = vsel %vm399, %v393, 0.0
    %v652 = vadd.f32 %v650, %v651
    %v653 = vsel %vm399, %v218, 0.0
    %v654 = vsel %vm399, %v234, 0.0
    %v655 = vadd.f32 %v653, %v654
    %v656 = vsel %vm399, %v250, 0.0
    %v657 = vadd.f32 %v655, %v656
    %v658 = vsel %vm399, %v266, 0.0
    %v659 = vadd.f32 %v657, %v658
    %v660 = vsel %vm399, %v282, 0.0
    %v661 = vadd.f32 %v659, %v660
    %v662 = vsel %vm399, %v298, 0.0
    %v663 = vadd.f32 %v661, %v662
    %v664 = vsel %vm399, %v314, 0.0
    %v665 = vadd.f32 %v663, %v664
    %v666 = vsel %vm399, %v330, 0.0
    %v667 = vadd.f32 %v665, %v666
    %v668 = vsel %vm399, %v346, 0.0
    %v669 = vadd.f32 %v667, %v668
    %v670 = vsel %vm399, %v362, 0.0
    %v671 = vadd.f32 %v669, %v670
    %v672 = vsel %vm399, %v378, 0.0
    %v673 = vadd.f32 %v671, %v672
    %v674 = vsel %vm399, %v394, 0.0
    %v675 = vadd.f32 %v673, %v674
    %v676 = vsel %vm399, %v219, 0.0
    %v677 = vsel %vm399, %v235, 0.0
    %v678 = vadd.f32 %v676, %v677
    %v679 = vsel %vm399, %v251, 0.0
    %v680 = vadd.f32 %v678, %v679
    %v681 = vsel %vm399, %v267, 0.0
    %v682 = vadd.f32 %v680, %v681
    %v683 = vsel %vm399, %v283, 0.0
    %v684 = vadd.f32 %v682, %v683
    %v685 = vsel %vm399, %v299, 0.0
    %v686 = vadd.f32 %v684, %v685
    %v687 = vsel %vm399, %v315, 0.0
    %v688 = vadd.f32 %v686, %v687
    %v689 = vsel %vm399, %v331, 0.0
    %v690 = vadd.f32 %v688, %v689
    %v691 = vsel %vm399, %v347, 0.0
    %v692 = vadd.f32 %v690, %v691
    %v693 = vsel %vm399, %v363, 0.0
    %v694 = vadd.f32 %v692, %v693
    %v695 = vsel %vm399, %v379, 0.0
    %v696 = vadd.f32 %v694, %v695
    %v697 = vsel %vm399, %v395, 0.0
    %v698 = vadd.f32 %v696, %v697
    %v699 = vsel %vm399, %v220, 0.0
    %v700 = vsel %vm399, %v236, 0.0
    %v701 = vadd.f32 %v699, %v700
    %v702 = vsel %vm399, %v252, 0.0
    %v703 = vadd.f32 %v701, %v702
    %v704 = vsel %vm399, %v268, 0.0
    %v705 = vadd.f32 %v703, %v704
    %v706 = vsel %vm399, %v284, 0.0
    %v707 = vadd.f32 %v705, %v706
    %v708 = vsel %vm399, %v300, 0.0
    %v709 = vadd.f32 %v707, %v708
    %v710 = vsel %vm399, %v316, 0.0
    %v711 = vadd.f32 %v709, %v710
    %v712 = vsel %vm399, %v332, 0.0
    %v713 = vadd.f32 %v711, %v712
    %v714 = vsel %vm399, %v348, 0.0
    %v715 = vadd.f32 %v713, %v714
    %v716 = vsel %vm399, %v364, 0.0
    %v717 = vadd.f32 %v715, %v716
    %v718 = vsel %vm399, %v380, 0.0
    %v719 = vadd.f32 %v717, %v718
    %v720 = vsel %vm399, %v396, 0.0
    %v721 = vadd.f32 %v719, %v720
    %v722 = vsel %vm399, %v221, 0.0
    %v723 = vsel %vm399, %v237, 0.0
    %v724 = vadd.f32 %v722, %v723
    %v725 = vsel %vm399, %v253, 0.0
    %v726 = vadd.f32 %v724, %v725
    %v727 = vsel %vm399, %v269, 0.0
    %v728 = vadd.f32 %v726, %v727
    %v729 = vsel %vm399, %v285, 0.0
    %v730 = vadd.f32 %v728, %v729
    %v731 = vsel %vm399, %v301, 0.0
    %v732 = vadd.f32 %v730, %v731
    %v733 = vsel %vm399, %v317, 0.0
    %v734 = vadd.f32 %v732, %v733
    %v735 = vsel %vm399, %v333, 0.0
    %v736 = vadd.f32 %v734, %v735
    %v737 = vsel %vm399, %v349, 0.0
    %v738 = vadd.f32 %v736, %v737
    %v739 = vsel %vm399, %v365, 0.0
    %v740 = vadd.f32 %v738, %v739
    %v741 = vsel %vm399, %v381, 0.0
    %v742 = vadd.f32 %v740, %v741
    %v743 = vsel %vm399, %v397, 0.0
    %v744 = vadd.f32 %v742, %v743
    %v745 = vsel %vm399, %v222, 0.0
    %v746 = vsel %vm399, %v238, 0.0
    %v747 = vadd.f32 %v745, %v746
    %v748 = vsel %vm399, %v254, 0.0
    %v749 = vadd.f32 %v747, %v748
    %v750 = vsel %vm399, %v270, 0.0
    %v751 = vadd.f32 %v749, %v750
    %v752 = vsel %vm399, %v286, 0.0
    %v753 = vadd.f32 %v751, %v752
    %v754 = vsel %vm399, %v302, 0.0
    %v755 = vadd.f32 %v753, %v754
    %v756 = vsel %vm399, %v318, 0.0
    %v757 = vadd.f32 %v755, %v756
    %v758 = vsel %vm399, %v334, 0.0
    %v759 = vadd.f32 %v757, %v758
    %v760 = vsel %vm399, %v350, 0.0
    %v761 = vadd.f32 %v759, %v760
    %v762 = vsel %vm399, %v366, 0.0
    %v763 = vadd.f32 %v761, %v762
    %v764 = vsel %vm399, %v382, 0.0
    %v765 = vadd.f32 %v763, %v764
    %v766 = vsel %vm399, %v398, 0.0
    %v767 = vadd.f32 %v765, %v766
    %v768 = vld [vmem:[%s0] sm:$0xf]
    %v769 = vpack.c.bf16 %v445, %v422
    %v770 = vpack.c.bf16 %v491, %v468
    %v771 = vpack.c.bf16 %v537, %v514
    %v772 = vpack.c.bf16 %v583, %v560
    %v773 = vpack.c.bf16 %v629, %v606
    %v774 = vpack.c.bf16 %v675, %v652
    %v775 = vpack.c.bf16 %v721, %v698
    %v776 = vpack.c.bf16 %v767, %v744
    %v778 = vsel %vm399, %v768, 0
    %v781 = vsel %vm399, %v769, 0
    %v784 = vsel %vm399, %v770, 0
    %v787 = vsel %vm399, %v771, 0
    %v790 = vsel %vm399, %v772, 0
    %v793 = vsel %vm399, %v773, 0
    %v796 = vsel %vm399, %v774, 0
    %v799 = vsel %vm399, %v775, 0
    %v802 = vsel %vm399, %v776, 0
    %804 = vmatpush.bf16.xpose.msra.mxu0 %v802
    %805 = vmatpush.bf16.xpose.msra.mxu0 %v799
    %806 = vmatpush.bf16.xpose.msra.mxu0 %v796
    %807 = vmatpush.bf16.xpose.msra.mxu0 %v793
    %808 = vmatpush.bf16.xpose.msra.mxu0 %v790
    %809 = vmatpush.bf16.xpose.msra.mxu0 %v787
    %810 = vmatpush.bf16.xpose.msra.mxu0 %v784
    %811 = vmatpush.bf16.xpose.msra.mxu0 %v781
    %812 = vmatmul.bf16.gmra.mxu0 %v778
    %v813 = vpop.f32.mrf.mxu0
    %v814 = vadd.f32 0.0, %v813
    %v815 = vpop.f32.mrf.mxu0
    %816 = vdwg.mxu0
    %v817 = vld [vmem:[%s2] sm:$0x1]
    %v819 = vperm.slane %v817, 0
    %v821 = vmul.f32 %v814, %v819
    %822 = vst [vmem:[#allocation2] sm:$0xff] %v821
    // Predicated region
    $region14: #{tpu_custom_call.1} parent=1 // pred_check
      _
    $region15: #{tpu_custom_call.1} parent=1 // pred_check_branch
      %824 = sbr.rel (0) target = $region17
    $region16: #{tpu_custom_call.1} parent=1 // pred_region
      %826 = vsyncadd [#allocation3], 0
      %s828 = sshll.u32 [#allocation2], 4
      %s829 = int_to_ptr.vmem [resolvable:$true] %s828
      %s830 = sshll.u32 %s3, 4
      %s831 = int_to_ptr.hbm [resolvable:$true] %s830
      %833 = dma.vmem_to_hbm [thread:$0]  %s829, 128, %s831, [#allocation3]
    $region17: #{tpu_custom_call.1} parent=1 // pred_fallthru
      _
    // Predicated region
    $region18: #{tpu_custom_call.1} parent=1 // pred_check
      _
    $region19: #{tpu_custom_call.1} parent=1 // pred_check_branch
      %835 = sbr.rel (0) target = $region21
    $region20: #{tpu_custom_call.1} parent=1 // pred_region
      %837 = dma.done [#allocation3], 128
    $region21: #{tpu_custom_call.1} parent=1 // pred_fallthru
      _
    %838 = vsyncpa [#allocation3], 1

</llo_original>
